<compile_context>
chip_gen: v6e
topology: v6e:2x2x1
jax: 0.10.0
libtpu: 0.0.40
codegen_flags: <defaults>
</compile_context>

<pallas_src>
import numpy as np
import jax
import jax.numpy as jnp
from jax import lax
from jax.experimental import pallas as pl
from jax.experimental.pallas import tpu as pltpu

_MAX_TILE_BYTES = 4 * 1024 * 1024     # max-reduction input tile
_APPLY_TILE_BYTES = 2 * 1024 * 1024   # apply-kernel image tile


# ----------------------------------------------------------------------------
# Small helpers
# ----------------------------------------------------------------------------
def _next_pow2(n):
    return 1 << (max(int(n), 1) - 1).bit_length()


def _sublane_multiple(itemsize):
    # Native sublane tile: 8 rows (4-byte), 16 (2-byte), 32 (1-byte) dtypes.
    return int(max(8, min(32, 8 * (4 // max(1, int(itemsize))))))


def _row_tile(nrows, w, itemsize, target_bytes):
    """Row-tile height: multiple of the native sublane tile (or the full dim),
    sized so one (tile, W) block is ~target_bytes.  The lane dim stays the full
    W, so blocks are lane-dense with zero padding and no post-kernel slice."""
    sub = _sublane_multiple(itemsize)
    if nrows <= sub or nrows * w * itemsize <= target_bytes:
        return int(nrows)
    t = (target_bytes // max(1, w * itemsize)) // sub * sub
    return int(max(sub, min(t, (nrows // sub) * sub)))


# ----------------------------------------------------------------------------
# Pallas kernel 1: per-row-tile partial max (two-stage, megacore friendly)
# ----------------------------------------------------------------------------
def _make_partial_max_kernel(total_rows, tr, w, dtype):
    ragged = (total_rows % tr) != 0
    if jnp.issubdtype(dtype, jnp.floating):
        fill = -jnp.inf
    else:
        fill = int(jnp.iinfo(dtype).min)

    def kernel(x_ref, o_ref):
        x = x_ref[...]                                     # (TR, W)
        if ragged:
            rows = pl.program_id(0) * tr + lax.broadcasted_iota(
                jnp.int32, (tr, w), 0)
            x = jnp.where(rows < total_rows, x, jnp.asarray(fill, x.dtype))
        m = jnp.max(x, axis=0, keepdims=True)              # (1, W) small reduce
        o_ref[...] = jnp.broadcast_to(m, o_ref.shape)      # (8, W) partial

    return kernel


def _pallas_partial_max(x2):
    """x2: (R, W). Returns (num_tiles*8, W) partial maxima."""
    r, w = x2.shape
    itemsize = jnp.dtype(x2.dtype).itemsize
    tr = _row_tile(r, w, itemsize, _MAX_TILE_BYTES)
    nt = -(-r // tr)
    return pl.pallas_call(
        _make_partial_max_kernel(r, tr, w, x2.dtype),
        out_shape=jax.ShapeDtypeStruct((nt * 8, w), x2.dtype),
        grid=(nt,),
        in_specs=[pl.BlockSpec((tr, w), lambda i: (i, 0))],
        out_specs=pl.BlockSpec((8, w), lambda i: (i, 0)),
        compiler_params=pltpu.CompilerParams(
            dimension_semantics=("parallel",)),            # both TCs on v7x
    )(x2)


# ----------------------------------------------------------------------------
# Pallas kernel 2: sparse masked overwrite of touched row-tiles only
# ----------------------------------------------------------------------------
def _apply_kernel(tile_ids_ref, val_ref, img_ref, mask_ref, out_ref):
    del tile_ids_ref                       # consumed by the index_maps only
    x = img_ref[...]                       # (1, TH, W) image tile
    m = mask_ref[...] != 0                 # (1, TH, W) int8 -> bool
    v = val_ref[0, 0].astype(x.dtype)      # global max, SMEM scalar
    out_ref[...] = jnp.where(m, v, x)


def _pallas_sparse_apply(img3, mask_slabs, val_arr, tile_ids):
    c, h, w = img3.shape
    n_ids, th, _ = mask_slabs.shape
    grid_spec = pltpu.PrefetchScalarGridSpec(
        num_scalar_prefetch=1,                             # tile_ids -> SMEM
        grid=(c, n_ids),
        in_specs=[
            pl.BlockSpec(memory_space=pltpu.MemorySpace.SMEM),          # val (1,1)
            pl.BlockSpec((1, th, w), lambda ci, vi, tids: (ci, tids[vi], 0)),
            pl.BlockSpec((1, th, w), lambda ci, vi, tids: (vi, 0, 0)),  # mask slab
        ],
        out_specs=pl.BlockSpec((1, th, w), lambda ci, vi, tids: (ci, tids[vi], 0)),
    )
    return pl.pallas_call(
        _apply_kernel,
        grid_spec=grid_spec,
        out_shape=jax.ShapeDtypeStruct((c, h, w), img3.dtype),
        # args: (tile_ids, val, img3, mask_slabs) -> donate img3 into output 0,
        # so tiles never visited keep their original contents with zero traffic.
        input_output_aliases={2: 0},
        compiler_params=pltpu.CompilerParams(
            dimension_semantics=("parallel", "arbitrary")),
    )(tile_ids, val_arr, img3, mask_slabs)


# ----------------------------------------------------------------------------
# Jitted wrapper: two-stage max -> sparse apply (no padding, no slicing)
# ----------------------------------------------------------------------------
@jax.jit
def _scratches_apply(img3, mask_slabs, tile_ids):
    """img3: (C, H, W); mask_slabs: (n_ids, TH, W) int8; tile_ids: (n_ids,) i32."""
    c, h, w = img3.shape

    # Global max: Pallas partial maxima over the contiguous (C*H, W) view,
    # tiny finishing reduce outside the kernel.  Computed in the image dtype.
    partials = _pallas_partial_max(img3.reshape(c * h, w))
    val = jnp.max(partials)
    if jnp.issubdtype(img3.dtype, jnp.floating):
        val_arr = val.astype(jnp.float32).reshape(1, 1)
    else:
        # TODO(synk): uint32 values above 2**31 would overflow this int32 scalar.
        val_arr = val.astype(jnp.int32).reshape(1, 1)

    return _pallas_sparse_apply(img3, mask_slabs, val_arr, tile_ids)


# ----------------------------------------------------------------------------
# Host-side scratch-mask generation (Bresenham walk, mirrors the torch loops)
# ----------------------------------------------------------------------------
def build_scratch_mask(cols, rows, num_cracks_max, max_length, max_width, rng):
    mask = np.zeros((cols, rows), dtype=np.int8)

    num_cracks = int(rng.integers(1, max(2, num_cracks_max)))
    x_start = rng.integers(0, rows, size=num_cracks)
    x_end = rng.integers(0, rows, size=num_cracks)
    y_start = rng.integers(0, cols, size=num_cracks)
    y_end = rng.integers(0, cols, size=num_cracks)
    length = rng.integers(1, max(2, max_length), size=num_cracks)
    width = rng.integers(1, max(2, max_width), size=num_cracks)

    dx = np.abs(x_end - x_start)
    dy = np.abs(y_end - y_start)
    sx = (x_start < x_end).astype(np.int64) * 2 - 1
    sy = (y_start < y_end).astype(np.int64) * 2 - 1
    err = dx - dy

    for i in range(num_cracks):
        xs, xe = int(x_start[i]), int(x_end[i])
        ys, ye = int(y_start[i]), int(y_end[i])
        ln, wd = int(length[i]), int(width[i])
        ddx, ddy = int(dx[i]), int(dy[i])
        ssx, ssy = int(sx[i]), int(sy[i])
        e = int(err[i])
        while xs != xe or ys != ye:
            mask[ys:ys + wd, xs:xs + ln] = 1
            e2 = 2 * e
            if e2 > -ddy:
                e -= ddy
                xs += ssx
            if e2 < ddx:
                e += ddx
                ys += ssy
    return mask


def _gather_touched(mask, th):
    """Touched row-tile ids + compact per-tile mask slabs (n_ids, TH, W) int8.

    The visit list is padded to a power of two (bounded number of compiled
    grid sizes) by repeating the last touched tile AND its slab, so duplicated
    grid steps write byte-identical data (safe under the output alias).
    """
    h, w = mask.shape
    nt = -(-h // th)
    mpad = np.zeros((nt * th, w), dtype=np.int8)
    mpad[:h] = mask
    tiles = mpad.reshape(nt, th, w)
    touched = np.flatnonzero(tiles.reshape(nt, -1).any(axis=1)).astype(np.int32)
    if touched.size == 0:
        return None, None
    n_ids = _next_pow2(touched.size)
    ids = np.full((n_ids,), touched[-1], dtype=np.int32)
    ids[:touched.size] = touched
    slabs = tiles[ids]                                     # (n_ids, TH, W)
    return ids, slabs


# ----------------------------------------------------------------------------
# Module-equivalent wrapper
# ----------------------------------------------------------------------------
class ScratchesPallas:
    """Pallas/JAX equivalent of the PyTorch `Scatches` augmentation module."""

    def __init__(self, probability=0.5, num_cracks=100, max_length=2,
                 max_width=2, seed=0):
        self.probability = probability
        self.num_cracks = num_cracks
        self.max_length = max_length
        self.max_width = max_width
        self._rng = np.random.default_rng(seed)   # host RNG (torch.rand analog)

    def __repr__(self):
        return (self.__class__.__name__ +
                '(probability={}, num_cracks={}, max_length={}, max_width={})'.format(
                    self.probability, self.num_cracks, self.max_length, self.max_width))

    def __call__(self, inp, batch_first=False):
        if self._rng.random() > self.probability:
            return inp
        # Works for (rgb, cols, rows) and (batch, rgb, cols, rows): the scratch
        # pattern broadcasts over all leading dims, exactly like the torch slicing.
        inp = jnp.asarray(inp)
        h, w = int(inp.shape[-2]), int(inp.shape[-1])
        lead = inp.shape[:-2]
        c = int(np.prod(lead)) if lead else 1

        mask = build_scratch_mask(h, w, self.num_cracks, self.max_length,
                                  self.max_width, self._rng)
        th = _row_tile(h, w, jnp.dtype(inp.dtype).itemsize, _APPLY_TILE_BYTES)
        tile_ids, mask_slabs = _gather_touched(mask, th)
        if tile_ids is None:   # degenerate cracks: nothing would be overwritten
            return inp

        out3 = _scratches_apply(inp.reshape(c, h, w),
                                jnp.asarray(mask_slabs),
                                jnp.asarray(tile_ids))
        return out3.reshape(inp.shape)


if __name__ == "__main__":
    key = jax.random.PRNGKey(0)
    x = jax.random.uniform(key, (2, 4, 16, 16), dtype=jnp.float32)
    c, h, w = 2 * 4, 16, 16

    # 1) Direct check of the Pallas kernels with a deterministic hand-made mask
    #    (guarantees the Pallas path executes regardless of RNG draws).
    mask = np.zeros((h, w), dtype=np.int8)
    mask[3:5, 2:9] = 1
    mask[10:12, 5:7] = 1
    th = _row_tile(h, w, 4, _APPLY_TILE_BYTES)
    ids, slabs = _gather_touched(mask, th)
    out = _scratches_apply(x.reshape(c, h, w), jnp.asarray(slabs), jnp.asarray(ids))
    out = jax.block_until_ready(out).reshape(x.shape)
    ref = jnp.where(jnp.asarray(mask)[None, None] != 0, jnp.max(x), x)
    assert out.shape == x.shape and out.dtype == x.dtype
    assert jnp.allclose(out, ref), "Pallas output mismatch vs reference (direct)"

    # 2) Module-level check: same host RNG stream as the wrapper.
    aug = ScratchesPallas(probability=1.0, num_cracks=10, max_length=2,
                          max_width=2, seed=0)
    out2 = jax.block_until_ready(aug(x))
    rng_ref = np.random.default_rng(0)
    _ = rng_ref.random()                      # the probability draw in __call__
    mask_ref = build_scratch_mask(h, w, 10, 2, 2, rng_ref)
    ref2 = jnp.where(jnp.asarray(mask_ref)[None, None] != 0, jnp.max(x), x)
    assert out2.shape == x.shape and out2.dtype == x.dtype
    assert jnp.allclose(out2, ref2), "Pallas output mismatch vs reference (module)"

    print("KERNEL_OK")
</pallas_src>

<mosaic_0001>
module attributes {stable_mosaic.version = 11 : i64} {
  func.func @kernel(%arg0: i32, %arg1: memref<128x16xf32, #tpu.memory_space<vmem>>, %arg2: memref<8x16xf32, #tpu.memory_space<vmem>>) attributes {dimension_semantics = [#tpu.dimension_semantics<parallel>], iteration_bounds = array<i64: 1>, scalar_prefetch = 0 : i64, scratch_operands = 0 : i64, tpu.core_type = #tpu.core_type<tc>, window_params = [{transform_indices = @transform_0, window_bounds = array<i64: 128, 16>}, {transform_indices = @transform_1, window_bounds = array<i64: 8, 16>}]} {
    %c0 = arith.constant 0 : index
    %c0_0 = arith.constant 0 : index
    %0 = vector.load %arg1[%c0, %c0_0] : memref<128x16xf32, #tpu.memory_space<vmem>>, vector<128x16xf32>
    %cst = arith.constant dense<0xFF800000> : vector<16xf32>
    %1 = vector.multi_reduction <maximumf>, %0, %cst [0] : vector<128x16xf32> to vector<16xf32>
    %2 = vector.shape_cast %1 : vector<16xf32> to vector<1x16xf32>
    %3 = vector.shape_cast %2 : vector<1x16xf32> to vector<1x16xf32>
    %4 = vector.broadcast %3 : vector<1x16xf32> to vector<8x16xf32>
    %c0_1 = arith.constant 0 : index
    %c0_2 = arith.constant 0 : index
    %5 = vector.load %arg2[%c0_1, %c0_2] : memref<8x16xf32, #tpu.memory_space<vmem>>, vector<8x16xf32>
    tpu.vector_store %arg2[%c0_1, %c0_2], %4 {strides = array<i32>} : memref<8x16xf32, #tpu.memory_space<vmem>>, vector<8x16xf32>,
    return
  }
  func.func @transform_0(%arg0: i32) -> (i32, i32) {
    %c0_i32 = arith.constant 0 : i32
    %c0_i32_0 = arith.constant 0 : i32
    return %arg0, %c0_i32 : i32, i32
  }
  func.func @transform_1(%arg0: i32) -> (i32, i32) {
    %c0_i32 = arith.constant 0 : i32
    %c0_i32_0 = arith.constant 0 : i32
    return %arg0, %c0_i32 : i32, i32
  }
}

module attributes {stable_mosaic.version = 11 : i64} {
  func.func @_apply_kernel(%arg0: i32, %arg1: i32, %arg2: memref<1xi32, #tpu.memory_space<smem>>, %arg3: memref<1x1xf32, #tpu.memory_space<smem>>, %arg4: memref<1x16x16xf32, #tpu.memory_space<vmem>>, %arg5: memref<1x16x16xi8, #tpu.memory_space<vmem>>, %arg6: memref<1x16x16xf32, #tpu.memory_space<vmem>>) attributes {dimension_semantics = [#tpu.dimension_semantics<parallel>, #tpu.dimension_semantics<arbitrary>], iteration_bounds = array<i64: 8, 1>, scalar_prefetch = 1 : i64, scratch_operands = 0 : i64, tpu.core_type = #tpu.core_type<tc>, window_params = [{transform_indices = @transform_0, window_bounds = array<i64: 1, 1>}, {transform_indices = @transform_1, window_bounds = array<i64: 1, 16, 16>}, {transform_indices = @transform_2, window_bounds = array<i64: 1, 16, 16>}, {transform_indices = @transform_3, window_bounds = array<i64: 1, 16, 16>}]} {
    %c0 = arith.constant 0 : index
    %c0_0 = arith.constant 0 : index
    %c0_1 = arith.constant 0 : index
    %0 = vector.load %arg4[%c0, %c0_0, %c0_1] : memref<1x16x16xf32, #tpu.memory_space<vmem>>, vector<1x16x16xf32>
    %c0_2 = arith.constant 0 : index
    %c0_3 = arith.constant 0 : index
    %c0_4 = arith.constant 0 : index
    %1 = vector.load %arg5[%c0_2, %c0_3, %c0_4] : memref<1x16x16xi8, #tpu.memory_space<vmem>>, vector<1x16x16xi8>
    %c0_i8 = arith.constant 0 : i8
    %2 = vector.broadcast %c0_i8 : i8 to vector<1x16x16xi8>
    %3 = arith.cmpi ne, %1, %2 : vector<1x16x16xi8>
    %c0_5 = arith.constant 0 : index
    %c0_6 = arith.constant 0 : index
    %4 = memref.load %arg3[%c0_5, %c0_6] : memref<1x1xf32, #tpu.memory_space<smem>>
    %5 = vector.broadcast %4 : f32 to vector<1x16x16xf32>
    %6 = arith.select %3, %5, %0 : vector<1x16x16xi1>, vector<1x16x16xf32>
    %c0_7 = arith.constant 0 : index
    %c0_8 = arith.constant 0 : index
    %c0_9 = arith.constant 0 : index
    %7 = vector.load %arg6[%c0_7, %c0_8, %c0_9] : memref<1x16x16xf32, #tpu.memory_space<vmem>>, vector<1x16x16xf32>
    tpu.vector_store %arg6[%c0_7, %c0_8, %c0_9], %6 {strides = array<i32>} : memref<1x16x16xf32, #tpu.memory_space<vmem>>, vector<1x16x16xf32>,
    return
  }
  func.func @transform_0(%arg0: i32, %arg1: i32, %arg2: memref<1xi32, #tpu.memory_space<smem>>) -> (i32, i32) {
    %c0_i32 = arith.constant 0 : i32
    %c0_i32_0 = arith.constant 0 : i32
    %c0_i32_1 = arith.constant 0 : i32
    return %c0_i32, %c0_i32_0 : i32, i32
  }
  func.func @transform_1(%arg0: i32, %arg1: i32, %arg2: memref<1xi32, #tpu.memory_space<smem>>) -> (i32, i32, i32) {
    %0 = arith.index_cast %arg1 : i32 to index
    %1 = memref.load %arg2[%0] : memref<1xi32, #tpu.memory_space<smem>>
    %c0_i32 = arith.constant 0 : i32
    %c0_i32_0 = arith.constant 0 : i32
    return %arg0, %1, %c0_i32 : i32, i32, i32
  }
  func.func @transform_2(%arg0: i32, %arg1: i32, %arg2: memref<1xi32, #tpu.memory_space<smem>>) -> (i32, i32, i32) {
    %c0_i32 = arith.constant 0 : i32
    %c0_i32_0 = arith.constant 0 : i32
    %c0_i32_1 = arith.constant 0 : i32
    return %arg1, %c0_i32, %c0_i32_0 : i32, i32, i32
  }
  func.func @transform_3(%arg0: i32, %arg1: i32, %arg2: memref<1xi32, #tpu.memory_space<smem>>) -> (i32, i32, i32) {
    %0 = arith.index_cast %arg1 : i32 to index
    %1 = memref.load %arg2[%0] : memref<1xi32, #tpu.memory_space<smem>>
    %c0_i32 = arith.constant 0 : i32
    %c0_i32_0 = arith.constant 0 : i32
    return %arg0, %1, %c0_i32 : i32, i32, i32
  }
}

</mosaic_0001>

<llo_original>
// kernel: _scratches_apply.3
$region0: #{_scratches_apply.3}
  #allocation0 [shape = 'u32[]', space=smem, size = 0x4, offset = 0x4, fixed_abs, tag = 'smem constant byte address 0x4 - core index']
  #allocation1 [shape = 'u32[144,128]{1,0:T(1,128)}', space=vmem, size = 0x12000, scoped, tag = 'internal scratch']
  #allocation2 [shape = 's32[1]{0}', space=sflag, size = 0x4, scoped, tag = 'scoped memory for _scratches_apply.3']
  #allocation3 [shape = 's32[1]{0:T(128)S(6)}', space=smem, size = 0x200, scoped, tag = 'prefetched SMEM operand 0']
  #allocation4 [shape = 'f32[1,1]{1,0:T(1,128)S(6)}', space=smem, size = 0x200, scoped, tag = 'scoped memory for _scratches_apply.3']
  %s0 = inlined_call_operand.<no memory space> [shape: s32[1], index: 0, kind: input, shape index: {}]
  %s1 = inlined_call_operand.<no memory space> [shape: f32[1,1], index: 1, kind: input, shape index: {}]
  %s2 = inlined_call_operand.hbm [shape: f32[8,16,16], index: 2, kind: input, shape index: {}, may-alias: {2,4}]
  %s3 = inlined_call_operand.vmem [shape: s8[1,16,16], index: 3, kind: input, shape index: {}]
  %s4 = inlined_call_operand.hbm [shape: f32[8,16,16], index: 4, kind: output, shape index: {}, may-alias: {2,4}]
  %s5 = sld [smem:[#allocation0]]
  $region49: #{_scratches_apply.3} parent=0
    _
  %s7 = ssub.s32 1, %s5
  %s8 = scalar_select 0, %s7, %s5
  %9 = sst [smem:[#allocation3]] %s0
  %10 = sst [smem:[#allocation4]] %s1
  $region1: #{_scratches_apply.3} parent=0
    #allocation5 [shape = 'u8[16384]{0}', space=vmem, size = 0x4000, scoped, tag = 'input window, operand 2']
    #allocation6 [shape = 's32[2]{0}', space=sflag, size = 0x8, scoped, tag = 'scoped memory for _scratches_apply.3']
    #allocation7 [shape = 's32[2]{0}', space=sflag, size = 0x8, scoped, tag = 'scoped memory for _scratches_apply.3']
    #allocation8 [shape = 'u8[16384]{0}', space=vmem, size = 0x4000, scoped, tag = 'output window, operand 0']
    %11 = vsyncpa [#allocation6], 0
    %s12 = scalar_lea.sflag [#allocation6], 1
    %13 = vsyncpa %s12, 0
    %14 = vsyncpa [#allocation7], 0
    %s15 = scalar_lea.sflag [#allocation7], 1
    %16 = vsyncpa %s15, 0
    loop: start=0, step=1, limit=10
    $region2: #{_scratches_apply.3} parent=1 // loop_pre_header
      _
    $region3: #{_scratches_apply.3} parent=1 // loop_header
      %s18 = sphi 0, %s22
      %p19 = scmp.ge.s32.totalorder %s18, 10
      %s25 = sphi 0, %s37
      %s26 = sphi 0, %s33
      %s27 = sphi 0, %s25
      %s28 = sphi 0, %s26
      %s29 = sphi 0, %s27
      %s30 = sphi 0, %s28
      %s38 = sphi 0, %s38
      %s40 = sphi 0, %s38
      %s41 = sphi 0, %s40
      %s55 = sphi 0, %s41
      %s65 = sphi 0, %s67
      %s68 = sphi 0, %s65
      %s69 = sphi 0, %s68
      %s85 = sphi 0, %s69
      %s91 = sphi 0, %s93
      %s94 = sphi 0, %s91
      %s95 = sphi 0, %s94
      %s111 = sphi 0, %s95
      %s121 = sphi 0, %s123
      %s124 = sphi 0, %s121
      %s125 = sphi 0, %s124
      %s141 = sphi 0, %s125
    $region4: #{_scratches_apply.3} parent=1 // loop_header_branch
      %21 = sbr.rel (%p19) target = $region8
    $region5: #{_scratches_apply.3} parent=1 // loop_body
      %s23 = ssub.s32 %s18, 1
      %s24 = ssub.s32 %s18, 2
      %s31 = sadd.s32 1, %s26
      %p32 = scmp.ge.s32.totalorder %s31, 1
      %s33 = scalar_select %p32, 0, %s31
      %s34 = sadd.s32 1, %s25
      %s35 = scalar_select %p32, %s34, %s25
      %p36 = scmp.ge.s32.totalorder %s35, 8
      %s37 = scalar_select %p36, 0, %s35
      %s39 = sadd.s32 %s38, 1
      %p42 = scmp.eq.s32.totalorder %s18, 7
      %p43 = scmp.ne.s32.totalorder %s38, %s40
      %p44 = scmp.eq.s32.totalorder %s18, 0
      %p45 = por %p43, %p44
      %p46 = scmp.ne.s32.totalorder %s38, %s40
      %p47 = scmp.eq.s32.totalorder %s23, 7
      %p48 = por %p46, %p47
      %p49 = scmp.ne.s32.totalorder %s40, %s41
      %p50 = scmp.eq.s32.totalorder %s23, 0
      %p51 = por %p49, %p50
      %p52 = scmp.ne.s32.totalorder %s40, %s41
      %p53 = scmp.eq.s32.totalorder %s24, 7
      %p54 = por %p52, %p53
      %p56 = scmp.ne.s32.totalorder %s41, %s55
      %p57 = scmp.eq.s32.totalorder %s24, 0
      %p58 = por %p56, %p57
      %s59 = sld [smem:[#allocation3 + %s26]]
      %s60 = sld [smem:[#allocation3 + %s33]]
      %s61 = ssub.s32 %s25, %s37
      %s62 = ssub.s32 %s59, %s60
      %s63 = sor.u32 %s61, %s62
      %p64 = scmp.eq.s32.totalorder %s63, 0
      %s66 = sadd.s32 %s65, 1
      %s67 = scalar_select %p64, %s65, %s66
      %p70 = pneg %p64
      %p71 = scmp.eq.s32.totalorder %s18, 7
      %p72 = por %p70, %p71
      %p73 = scmp.ne.s32.totalorder %s65, %s68
      %p74 = scmp.eq.s32.totalorder %s18, 0
      %p75 = por %p73, %p74
      %p76 = scmp.ne.s32.totalorder %s65, %s68
      %p77 = scmp.eq.s32.totalorder %s23, 7
      %p78 = por %p76, %p77
      %p79 = scmp.ne.s32.totalorder %s68, %s69
      %p80 = scmp.eq.s32.totalorder %s23, 0
      %p81 = por %p79, %p80
      %p82 = scmp.ne.s32.totalorder %s68, %s69
      %p83 = scmp.eq.s32.totalorder %s24, 7
      %p84 = por %p82, %p83
      %p86 = scmp.ne.s32.totalorder %s69, %s85
      %p87 = scmp.eq.s32.totalorder %s24, 0
      %p88 = por %p86, %p87
      %s89 = ssub.s32 %s26, %s33
      %p90 = scmp.eq.s32.totalorder %s89, 0
      %s92 = sadd.s32 %s91, 1
      %s93 = scalar_select %p90, %s91, %s92
      %p96 = pneg %p90
      %p97 = scmp.eq.s32.totalorder %s18, 7
      %p98 = por %p96, %p97
      %p99 = scmp.ne.s32.totalorder %s91, %s94
      %p100 = scmp.eq.s32.totalorder %s18, 0
      %p101 = por %p99, %p100
      %p102 = scmp.ne.s32.totalorder %s91, %s94
      %p103 = scmp.eq.s32.totalorder %s23, 7
      %p104 = por %p102, %p103
      %p105 = scmp.ne.s32.totalorder %s94, %s95
      %p106 = scmp.eq.s32.totalorder %s23, 0
      %p107 = por %p105, %p106
      %p108 = scmp.ne.s32.totalorder %s94, %s95
      %p109 = scmp.eq.s32.totalorder %s24, 7
      %p110 = por %p108, %p109
      %p112 = scmp.ne.s32.totalorder %s95, %s111
      %p113 = scmp.eq.s32.totalorder %s24, 0
      %p114 = por %p112, %p113
      %s115 = sld [smem:[#allocation3 + %s26]]
      %s116 = sld [smem:[#allocation3 + %s33]]
      %s117 = ssub.s32 %s25, %s37
      %s118 = ssub.s32 %s115, %s116
      %s119 = sor.u32 %s117, %s118
      %p120 = scmp.eq.s32.totalorder %s119, 0
      %s122 = sadd.s32 %s121, 1
      %s123 = scalar_select %p120, %s121, %s122
      %p126 = pneg %p120
      %p127 = scmp.eq.s32.totalorder %s18, 7
      %p128 = por %p126, %p127
      %p129 = scmp.ne.s32.totalorder %s121, %s124
      %p130 = scmp.eq.s32.totalorder %s18, 0
      %p131 = por %p129, %p130
      %p132 = scmp.ne.s32.totalorder %s121, %s124
      %p133 = scmp.eq.s32.totalorder %s23, 7
      %p134 = por %p132, %p133
      %p135 = scmp.ne.s32.totalorder %s124, %s125
      %p136 = scmp.eq.s32.totalorder %s23, 0
      %p137 = por %p135, %p136
      %p138 = scmp.ne.s32.totalorder %s124, %s125
      %p139 = scmp.eq.s32.totalorder %s24, 7
      %p140 = por %p138, %p139
      %p142 = scmp.ne.s32.totalorder %s125, %s141
      %p143 = scmp.eq.s32.totalorder %s24, 0
      %p144 = por %p142, %p143
      %p145 = scmp.le.s32.totalorder 1, %s18
      %p146 = scmp.lt.s32.totalorder %s18, 9
      %p147 = pnand %p145, %p146
      %p148 = pneg %p147
      // Predicated region
      $region9: #{_scratches_apply.3} parent=5 // pred_check
        _
      $region10: #{_scratches_apply.3} parent=5 // pred_check_branch
        %150 = sbr.rel (%p147) target = $region12
      $region11: #{_scratches_apply.3} parent=5 // pred_region
        %s151 = ssub.s32 %s18, 1
        // Predicated region
        $region13: #{_scratches_apply.3} parent=11 // pred_check
          %p152 = pneg %p51
        $region14: #{_scratches_apply.3} parent=11 // pred_check_branch
          %154 = sbr.rel (%p152) target = $region16
        $region15: #{_scratches_apply.3} parent=11 // pred_region
          _
        $region16: #{_scratches_apply.3} parent=11 // pred_fallthru
          _
        // Predicated region
        $region17: #{_scratches_apply.3} parent=11 // pred_check
          %p155 = pneg %p107
        $region18: #{_scratches_apply.3} parent=11 // pred_check_branch
          %157 = sbr.rel (%p155) target = $region20
        $region19: #{_scratches_apply.3} parent=11 // pred_region
          %p158 = scmp.lt.s32.totalorder %s28, 0
          %s159 = scalar_select %p158, %s28, 0
          %s160 = smul.addr %s159, 2
          %s161 = smul.addr %s160, 2
          %s162 = scalar_lea.vmem %s3, %s161
        $region20: #{_scratches_apply.3} parent=11 // pred_fallthru
          _
      $region12: #{_scratches_apply.3} parent=5 // pred_fallthru
        _
      %p163 = scmp.lt.s32.totalorder %s18, 8
      // Predicated region
      $region21: #{_scratches_apply.3} parent=5 // pred_check
        %p164 = pneg %p163
      $region22: #{_scratches_apply.3} parent=5 // pred_check_branch
        %166 = sbr.rel (%p164) target = $region24
      $region23: #{_scratches_apply.3} parent=5 // pred_region
        // Predicated region
        $region25: #{_scratches_apply.3} parent=23 // pred_check
          %p167 = pneg %p75
        $region26: #{_scratches_apply.3} parent=23 // pred_check_branch
          %169 = sbr.rel (%p167) target = $region28
        $region27: #{_scratches_apply.3} parent=23 // pred_region
          %s170 = sand.u32 %s65, 1
          %s171 = scalar_lea.sflag [#allocation6], %s170
          %s172 = sand.u32 %s65, 1
          %s173 = smul.addr %s172, 16
          %s174 = scalar_lea.vmem [#allocation5], %s173
          %s175 = sld [smem:[#allocation3 + %s26]]
          %s176 = smul.u32 2, %s175
          %s178 = ssub.s32 256, 256
          %179 = vsyncadd %s171, %s178
          %s180 = smul.addr %s25, 2
          %s181 = sadd.s32 %s176, %s180
          %s182 = smul.addr %s181, 128
          %s183 = scalar_lea.hbm %s2, %s182
          %s184 = sshll.u32 %s174, 4
          %s185 = int_to_ptr.vmem [resolvable:$true] %s184
          %190 = dma.hbm_to_vmem [thread:$0]  %s183, 256, %s185, %s171, 128, 128, 8
        $region28: #{_scratches_apply.3} parent=23 // pred_fallthru
          _
      $region24: #{_scratches_apply.3} parent=5 // pred_fallthru
        _
      %p191 = scmp.le.s32.totalorder 1, %s18
      %p192 = scmp.lt.s32.totalorder %s18, 9
      %p193 = pnand %p191, %p192
      %p194 = pneg %p193
      // Predicated region
      $region29: #{_scratches_apply.3} parent=5 // pred_check
        _
      $region30: #{_scratches_apply.3} parent=5 // pred_check_branch
        %196 = sbr.rel (%p193) target = $region32
      $region31: #{_scratches_apply.3} parent=5 // pred_region
        %s197 = ssub.s32 %s18, 1
        %s198 = sand.u32 %s68, 1
        %s199 = scalar_lea.sflag [#allocation6], %s198
        %s200 = sand.u32 %s68, 1
        %s201 = smul.addr %s200, 16
        %s202 = scalar_lea.vmem [#allocation5], %s201
        // Predicated region
        $region33: #{_scratches_apply.3} parent=31 // pred_check
          %p203 = pneg %p81
        $region34: #{_scratches_apply.3} parent=31 // pred_check_branch
          %205 = sbr.rel (%p203) target = $region36
        $region35: #{_scratches_apply.3} parent=31 // pred_region
          %206 = dma.done %s199, 256
        $region36: #{_scratches_apply.3} parent=31 // pred_fallthru
          _
        %p207 = pneg %p51
        %p208 = pneg %p48
        %s209 = sand.u32 %s68, 1
        %s210 = scalar_lea.sflag [#allocation6], %s209
        %s211 = sand.u32 %s68, 1
        %s212 = smul.addr %s211, 16
        %s213 = scalar_lea.vmem [#allocation5], %s212
        %p214 = pneg %p81
        %p215 = pneg %p78
        %p216 = scmp.lt.s32.totalorder %s28, 0
        %s217 = scalar_select %p216, %s28, 0
        %s218 = smul.addr %s217, 2
        %s219 = smul.addr %s218, 2
        %s220 = scalar_lea.vmem %s3, %s219
        %p221 = pneg %p107
        %p222 = pneg %p104
        %p223 = pneg %p137
        %p224 = pneg %p134
        %s225 = sand.u32 %s124, 1
        %s226 = scalar_lea.sflag [#allocation7], %s225
        %s227 = sand.u32 %s124, 1
        %s228 = smul.addr %s227, 16
        %s229 = scalar_lea.vmem [#allocation8], %s228
        %s230 = sld [smem:[#allocation3 + %s28]]
        %s231 = smul.u32 2, %s230
        %p232 = scmp.lt.s32.totalorder %s28, 0
        %s233 = scalar_select %p232, %s28, 0
        %s234 = smul.addr %s233, 2
        %s235 = smul.addr %s234, 2
        %s236 = scalar_lea.vmem %s3, %s235
        %s237 = sld [smem:[#allocation3 + %s28]]
        %s238 = smul.u32 2, %s237
        %v241 = vld [vmem:[%s202] sm:$0xff]
        %v242 = vld [vmem:[%s202 + $0x8] sm:$0xff]
        %v243 = vld [vmem:[%s236] sm:$0x3]
        %v244 = vld [vmem:[%s236 + $0x2] sm:$0x3]
        %vm245 = vnez %v243
        %vm246 = vnez %v244
        %s247 = sld [smem:[#allocation4]]
        %v248 = vstv %s247
        %v249 = vsel %vm245, 16843009, 0
        %v250 = vsel %vm246, 16843009, 0
        %v251 = vunpack.c.0.s8 %v249
        %v252 = vunpack.c.0.s8 %v250
        %vm253 = vcmp.ne.s32.totalorder %v251, 0
        %vm254 = vcmp.ne.s32.totalorder %v252, 0
        %v255 = vsel %vm253, %v248, %v241
        %v256 = vsel %vm254, %v248, %v242
        %vm257 = vcmask 130048
        %258 = vst.msk [vmem:[%s229] sm:$0xff] %vm257, %v255
        %259 = vst.msk [vmem:[%s229 + $0x8] sm:$0xff] %vm257, %v256
        %s260 = sand.u32 %s124, 1
        %s261 = scalar_lea.sflag [#allocation7], %s260
        %s262 = sand.u32 %s124, 1
        %s263 = smul.addr %s262, 16
        %s264 = scalar_lea.vmem [#allocation8], %s263
        // Predicated region
        $region37: #{_scratches_apply.3} parent=31 // pred_check
          %p265 = pneg %p134
        $region38: #{_scratches_apply.3} parent=31 // pred_check_branch
          %267 = sbr.rel (%p265) target = $region40
        $region39: #{_scratches_apply.3} parent=31 // pred_region
          %s268 = sld [smem:[#allocation3 + %s28]]
          %s269 = smul.u32 2, %s268
          %s271 = ssub.s32 256, 256
          %272 = vsyncadd %s261, %s271
          %s273 = smul.addr %s27, 2
          %s274 = sadd.s32 %s269, %s273
          %s275 = smul.addr %s274, 128
          %s276 = scalar_lea.hbm %s4, %s275
          %s277 = sshll.u32 %s264, 4
          %s278 = int_to_ptr.vmem [resolvable:$true] %s277
          %283 = dma.vmem_to_hbm [thread:$0]  %s278, 256, %s276, %s261, 128, 128, 8
        $region40: #{_scratches_apply.3} parent=31 // pred_fallthru
          _
      $region32: #{_scratches_apply.3} parent=5 // pred_fallthru
        _
      %p284 = scmp.le.s32.totalorder 2, %s18
      // Predicated region
      $region41: #{_scratches_apply.3} parent=5 // pred_check
        %p285 = pneg %p284
      $region42: #{_scratches_apply.3} parent=5 // pred_check_branch
        %287 = sbr.rel (%p285) target = $region44
      $region43: #{_scratches_apply.3} parent=5 // pred_region
        %s288 = ssub.s32 %s18, 2
        // Predicated region
        $region45: #{_scratches_apply.3} parent=43 // pred_check
          %p289 = pneg %p140
        $region46: #{_scratches_apply.3} parent=43 // pred_check_branch
          %291 = sbr.rel (%p289) target = $region48
        $region47: #{_scratches_apply.3} parent=43 // pred_region
          %s292 = sand.u32 %s125, 1
          %s293 = scalar_lea.sflag [#allocation7], %s292
          %s294 = sand.u32 %s125, 1
          %s295 = smul.addr %s294, 16
          %s296 = scalar_lea.vmem [#allocation8], %s295
          %297 = dma.done %s293, 256
        $region48: #{_scratches_apply.3} parent=43 // pred_fallthru
          _
      $region44: #{_scratches_apply.3} parent=5 // pred_fallthru
        _
    $region6: #{_scratches_apply.3} parent=1 // loop_footer
      %s22 = sadd.s32 1, %s18
    $region7: #{_scratches_apply.3} parent=1 // loop_footer_branch
      %17 = sbr.rel target = $region3
    $region8: #{_scratches_apply.3} parent=1 // loop_exit
      _
    %298 = vsyncpa [#allocation6], 1
    %s299 = scalar_lea.sflag [#allocation6], 1
    %300 = vsyncpa %s299, 1
    %301 = vsyncpa [#allocation7], 1
    %s302 = scalar_lea.sflag [#allocation7], 1
    %303 = vsyncpa %s302, 1

// kernel: _scratches_apply.2
$region0: #{_scratches_apply.2}
  #allocation0 [shape = 'u32[]', space=smem, size = 0x4, offset = 0x4, fixed_abs, tag = 'smem constant byte address 0x4 - core index']
  #allocation1 [shape = 'u32[144,128]{1,0:T(1,128)}', space=vmem, size = 0x12000, scoped, tag = 'internal scratch']
  %s0 = inlined_call_operand.vmem [shape: f32[128,16], index: 0, kind: input, shape index: {}]
  %s1 = inlined_call_operand.vmem [shape: f32[8,16], index: 1, kind: output, shape index: {}]
  %s2 = sld [smem:[#allocation0]]
  $region14: #{_scratches_apply.2} parent=0
    _
  %s4 = ssub.s32 1, %s2
  %s5 = scalar_select 0, %s4, %s2
  // Predicated region
  $region2: #{_scratches_apply.2} parent=0 // pred_check
    _
  $region3: #{_scratches_apply.2} parent=0 // pred_check_branch
    %7 = sbr.rel (0) target = $region5
  $region4: #{_scratches_apply.2} parent=0 // pred_region
    _
  $region5: #{_scratches_apply.2} parent=0 // pred_fallthru
    _
  %v8 = vld [vmem:[%s0] sm:$0xff]
  %v9 = vld [vmem:[%s0 + $0x8] sm:$0xff]
  %v10 = vld [vmem:[%s0 + $0x10] sm:$0xff]
  %v11 = vld [vmem:[%s0 + $0x18] sm:$0xff]
  %v12 = vld [vmem:[%s0 + $0x20] sm:$0xff]
  %v13 = vld [vmem:[%s0 + $0x28] sm:$0xff]
  %v14 = vld [vmem:[%s0 + $0x30] sm:$0xff]
  %v15 = vld [vmem:[%s0 + $0x38] sm:$0xff]
  %v16 = vld [vmem:[%s0 + $0x40] sm:$0xff]
  %v17 = vld [vmem:[%s0 + $0x48] sm:$0xff]
  %v18 = vld [vmem:[%s0 + $0x50] sm:$0xff]
  %v19 = vld [vmem:[%s0 + $0x58] sm:$0xff]
  %v20 = vld [vmem:[%s0 + $0x60] sm:$0xff]
  %v21 = vld [vmem:[%s0 + $0x68] sm:$0xff]
  %v22 = vld [vmem:[%s0 + $0x70] sm:$0xff]
  %v23 = vld [vmem:[%s0 + $0x78] sm:$0xff]
  %vm24 = vcmask 130048
  %v25 = vsel %vm24, %v8, -inf
  %v26 = vsel %vm24, %v9, -inf
  %v27 = vsel %vm24, %v10, -inf
  %v28 = vsel %vm24, %v11, -inf
  %v29 = vsel %vm24, %v12, -inf
  %v30 = vmax.f32 %v25, %v29
  %v31 = vsel %vm24, %v13, -inf
  %v32 = vmax.f32 %v26, %v31
  %v33 = vsel %vm24, %v14, -inf
  %v34 = vmax.f32 %v27, %v33
  %v35 = vsel %vm24, %v15, -inf
  %v36 = vmax.f32 %v28, %v35
  %v37 = vsel %vm24, %v16, -inf
  %v38 = vmax.f32 %v30, %v37
  %v39 = vsel %vm24, %v17, -inf
  %v40 = vmax.f32 %v32, %v39
  %v41 = vsel %vm24, %v18, -inf
  %v42 = vmax.f32 %v34, %v41
  %v43 = vsel %vm24, %v19, -inf
  %v44 = vmax.f32 %v36, %v43
  %v45 = vsel %vm24, %v20, -inf
  %v46 = vmax.f32 %v38, %v45
  %v47 = vsel %vm24, %v21, -inf
  %v48 = vmax.f32 %v40, %v47
  %v49 = vsel %vm24, %v22, -inf
  %v50 = vmax.f32 %v42, %v49
  %v51 = vsel %vm24, %v23, -inf
  %v52 = vmax.f32 %v44, %v51
  %v53 = vmax.f32 %v46, %v48
  %v54 = vmax.f32 %v50, %v52
  %v55 = vmax.f32 %v53, %v54
  %v56 = vrot.slane %v55, 4
  %v57 = vmax.f32 %v55, %v56
  %v58 = vrot.slane %v57, 2
  %v59 = vmax.f32 %v57, %v58
  %v60 = vrot.slane %v59, 1
  %v61 = vmax.f32 %v59, %v60
  %62 = vst.msk [vmem:[%s1] sm:$0xff] %vm24, %v61
  // Predicated region
  $region6: #{_scratches_apply.2} parent=0 // pred_check
    _
  $region7: #{_scratches_apply.2} parent=0 // pred_check_branch
    %64 = sbr.rel (0) target = $region9
  $region8: #{_scratches_apply.2} parent=0 // pred_region
    _
  $region9: #{_scratches_apply.2} parent=0 // pred_fallthru
    _
  // Predicated region
  $region10: #{_scratches_apply.2} parent=0 // pred_check
    _
  $region11: #{_scratches_apply.2} parent=0 // pred_check_branch
    %66 = sbr.rel (0) target = $region13
  $region12: #{_scratches_apply.2} parent=0 // pred_region
    _
  $region13: #{_scratches_apply.2} parent=0 // pred_fallthru
    _

</llo_original>
